<compile_context>
chip_gen: v6e
topology: v6e:2x2x1
jax: 0.10.0
libtpu: 0.0.40
codegen_flags: <defaults>
</compile_context>

<pallas_src>
import math

import jax
import jax.numpy as jnp
from jax.experimental import pallas as pl
from jax.experimental.pallas import tpu as pltpu

_LANE = 128
_SUBLANE = 8


def _drop_path_kernel(scale_ref, x_ref, o_ref):
    """scale_ref: VMEM (TB,1[,1]) f32; x_ref/o_ref: VMEM (TB, ...) in x.dtype."""
    s = scale_ref[...].astype(x_ref.dtype)     # cast once; keep bf16 native
    o_ref[...] = x_ref[...] * s                # broadcast multiply, store


def _tile_target_bytes():
    # ~2 MiB/buffer is ~85%+ of HBM roofline on v5e/v6e; on v7x (~3.2 TB/s)
    # the ~0.35 us/grid-step overhead favours ~4 MiB tiles.
    try:
        kind = jax.devices()[0].device_kind.lower()
    except Exception:  # pragma: no cover - defensive, e.g. interpret mode
        kind = ""
    return 4 * 1024 * 1024 if "v7" in kind else 2 * 1024 * 1024


def _vmem_limit(tile_bytes):
    # 2 in + 2 out pipelined buffers = 4 * tile_bytes; 8x gives 2x headroom.
    return int(min(64 * 1024 * 1024, max(16 * 1024 * 1024, 8 * tile_bytes)))


def drop_path_pallas(x, drop_prob=0.0, training=False, *, key=None):
    """Pallas implementation of drop_path(x, drop_prob, training)."""
    if drop_prob == 0.0 or not training:
        return x
    assert key is not None, "need a PRNG key in training mode with drop_prob > 0"

    drop_prob = float(drop_prob)
    keep_prob = 1.0 - drop_prob

    B = x.shape[0]
    orig_shape = x.shape
    n = math.prod(x.shape[1:]) if x.ndim > 1 else 1

    # Per-sample scale = floor(keep_prob + U(0,1)) / keep_prob, precomputed once.
    u = jax.random.uniform(key, (B,), dtype=jnp.float32)
    mask = jnp.floor(keep_prob + u)
    inv_keep = (1.0 / keep_prob) if keep_prob > 0.0 else 0.0  # guard drop_prob==1
    scale = mask * inv_keep                                    # (B,) f32

    itemsize = jnp.dtype(x.dtype).itemsize
    target = _tile_target_bytes()
    x_flat = x.reshape(B, n)

    # TODO(synk): skip the HBM read of fully-dropped samples via scalar
    # prefetch (return previous block index from x's index_map + pl.when zero
    # store) — saves ~drop_prob/2 of total traffic when tile_b == 1.
    # TODO(synk): if DropPath sits next to a residual add, fuse it at the call
    # site (out = residual + scale*x) instead of running this standalone.

    # ---------------- Ragged feature dim: 2-D (B, n) layout, no padding ----
    if (n % _LANE) != 0 and n * itemsize <= target:
        row_bytes = n * itemsize
        if B < 2 * _SUBLANE:
            tile_b = B                               # block dim == full array dim
        else:
            budget_b = max(_SUBLANE, (target // row_bytes) // _SUBLANE * _SUBLANE)
            half_b = max(_SUBLANE, (B // 2) // _SUBLANE * _SUBLANE)  # >=2 steps
            tile_b = min(B, budget_b, half_b)
        tile_bytes = tile_b * row_bytes
        out = pl.pallas_call(
            _drop_path_kernel,
            out_shape=jax.ShapeDtypeStruct((B, n), x.dtype),
            grid=(pl.cdiv(B, tile_b),),
            in_specs=[
                pl.BlockSpec((tile_b, 1), lambda b: (b, 0)),   # scale
                pl.BlockSpec((tile_b, n), lambda b: (b, 0)),   # x (full row)
            ],
            out_specs=pl.BlockSpec((tile_b, n), lambda b: (b, 0)),
            compiler_params=pltpu.CompilerParams(
                dimension_semantics=("parallel",),
                vmem_limit_bytes=_vmem_limit(tile_bytes),
            ),
        )(scale.reshape(B, 1), x_flat)
        return out.reshape(orig_shape)

    # ---------------- Lane-dense 3-D layout: (B, R, 128) -------------------
    # Only pad when strictly required (ragged n with rows too big for a tile).
    n_pad = pl.cdiv(n, _LANE) * _LANE
    padded = n_pad != n
    if padded:
        x_flat = jnp.pad(x_flat, ((0, 0), (0, n_pad - n)))
    R = n_pad // _LANE
    x3 = x_flat.reshape(B, R, _LANE)

    row_bytes = _LANE * itemsize
    sample_bytes = R * row_bytes

    if sample_bytes >= target:
        # Large samples: one sample per block, tile the row dimension.
        tile_b = 1
        tile_r = max(_SUBLANE,
                     min(R, (target // row_bytes) // _SUBLANE * _SUBLANE))
    elif B > 1:
        # Small samples: fold batch rows to amortize per-step overhead while
        # keeping >= 2 parallel grid steps (v7x has 2 TensorCores).
        tile_r = R
        tile_b = min(B, max(1, target // sample_bytes), pl.cdiv(B, 2))
    else:
        # B == 1, small sample: split the row dim so both v7x TCs get work.
        tile_b = 1
        tile_r = R if R <= _SUBLANE else pl.cdiv(pl.cdiv(R, 2), _SUBLANE) * _SUBLANE

    tile_bytes = tile_b * tile_r * _LANE * itemsize
    grid = (pl.cdiv(B, tile_b), pl.cdiv(R, tile_r))

    out3 = pl.pallas_call(
        _drop_path_kernel,
        out_shape=jax.ShapeDtypeStruct((B, R, _LANE), x.dtype),
        grid=grid,
        in_specs=[
            pl.BlockSpec((tile_b, 1, 1), lambda b, r: (b, 0, 0)),           # scale
            pl.BlockSpec((tile_b, tile_r, _LANE), lambda b, r: (b, r, 0)),  # x
        ],
        out_specs=pl.BlockSpec((tile_b, tile_r, _LANE), lambda b, r: (b, r, 0)),
        compiler_params=pltpu.CompilerParams(
            dimension_semantics=("parallel", "parallel"),
            vmem_limit_bytes=_vmem_limit(tile_bytes),
        ),
    )(scale.reshape(B, 1, 1), x3)

    out_flat = out3.reshape(B, n_pad)
    if padded:
        out_flat = out_flat[:, :n]
    return out_flat.reshape(orig_shape)


def drop_path_ref(x, rand, drop_prob, training):
    """Pure-JAX reference mirroring the PyTorch code (same rand draws)."""
    if drop_prob == 0.0 or not training:
        return x
    keep_prob = 1.0 - drop_prob
    shape = (x.shape[0],) + (1,) * (x.ndim - 1)
    mask = jnp.floor(keep_prob + rand.reshape(shape).astype(jnp.float32))
    out = (x.astype(jnp.float32) / keep_prob) * mask
    return out.astype(x.dtype)


if __name__ == "__main__":
    key = jax.random.PRNGKey(0)
    k_x1, k_x2, k_x3, k_x4, k_mask = jax.random.split(key, 5)

    drop_prob = 0.3

    # Case 1: (B, C, T) with n = 640 — multiple of 128 but not of 1024.
    # Previously hit the pad+slice path; now runs pad-free.
    B, C, T = 2, 4, 160
    x1 = jax.random.normal(k_x1, (B, C, T), dtype=jnp.float32)
    out1 = jax.block_until_ready(drop_path_pallas(x1, drop_prob, True, key=k_mask))
    rand1 = jax.random.uniform(k_mask, (B,), dtype=jnp.float32)
    ref1 = drop_path_ref(x1, rand1, drop_prob, True)
    assert out1.shape == x1.shape and out1.dtype == x1.dtype
    assert jnp.allclose(out1, ref1, atol=1e-6, rtol=1e-6)

    # Case 2: batch-folded small samples, bf16 input (native bf16 multiply).
    B2, C2, T2 = 4, 8, 512
    x2 = jax.random.normal(k_x2, (B2, C2, T2), dtype=jnp.bfloat16)
    out2 = jax.block_until_ready(drop_path_pallas(x2, drop_prob, True, key=k_mask))
    rand2 = jax.random.uniform(k_mask, (B2,), dtype=jnp.float32)
    ref2 = drop_path_ref(x2, rand2, drop_prob, True)
    assert out2.shape == x2.shape and out2.dtype == x2.dtype
    assert jnp.allclose(out2.astype(jnp.float32), ref2.astype(jnp.float32),
                        atol=1e-2, rtol=1e-2)

    # Case 3: ragged feature dim (n = 150, not a multiple of 128) — 2-D path.
    B3, C3, T3 = 2, 3, 50
    x3 = jax.random.normal(k_x3, (B3, C3, T3), dtype=jnp.float32)
    out3 = jax.block_until_ready(drop_path_pallas(x3, drop_prob, True, key=k_mask))
    rand3 = jax.random.uniform(k_mask, (B3,), dtype=jnp.float32)
    ref3 = drop_path_ref(x3, rand3, drop_prob, True)
    assert out3.shape == x3.shape and out3.dtype == x3.dtype
    assert jnp.allclose(out3, ref3, atol=1e-6, rtol=1e-6)

    # Case 4: B == 1 small sample — row dim split into >= 2 parallel steps.
    B4, C4, T4 = 1, 16, 1024
    x4 = jax.random.normal(k_x4, (B4, C4, T4), dtype=jnp.float32)
    out4 = jax.block_until_ready(drop_path_pallas(x4, drop_prob, True, key=k_mask))
    rand4 = jax.random.uniform(k_mask, (B4,), dtype=jnp.float32)
    ref4 = drop_path_ref(x4, rand4, drop_prob, True)
    assert out4.shape == x4.shape and out4.dtype == x4.dtype
    assert jnp.allclose(out4, ref4, atol=1e-6, rtol=1e-6)

    # Eval path / drop_prob == 0 are identity passthroughs (like PyTorch).
    out_eval = jax.block_until_ready(drop_path_pallas(x1, drop_prob, False))
    assert jnp.array_equal(out_eval, x1)
    out_p0 = jax.block_until_ready(drop_path_pallas(x1, 0.0, True, key=k_mask))
    assert jnp.array_equal(out_p0, x1)

    # drop_prob == 1.0: all samples dropped, no NaN (guarded division).
    out_all = jax.block_until_ready(drop_path_pallas(x1, 1.0, True, key=k_mask))
    assert jnp.array_equal(out_all, jnp.zeros_like(x1))

    print("KERNEL_OK")
</pallas_src>

<mosaic_0001>
module attributes {stable_mosaic.version = 11 : i64} {
  func.func @_drop_path_kernel(%arg0: i32, %arg1: i32, %arg2: memref<1x1x1xf32, #tpu.memory_space<vmem>>, %arg3: memref<1x5x128xf32, #tpu.memory_space<vmem>>, %arg4: memref<1x5x128xf32, #tpu.memory_space<vmem>>) attributes {dimension_semantics = [#tpu.dimension_semantics<parallel>, #tpu.dimension_semantics<parallel>], iteration_bounds = array<i64: 2, 1>, scalar_prefetch = 0 : i64, scratch_operands = 0 : i64, tpu.core_type = #tpu.core_type<tc>, window_params = [{transform_indices = @transform_0, window_bounds = array<i64: 1, 1, 1>}, {transform_indices = @transform_1, window_bounds = array<i64: 1, 5, 128>}, {transform_indices = @transform_2, window_bounds = array<i64: 1, 5, 128>}]} {
    %c0 = arith.constant 0 : index
    %c0_0 = arith.constant 0 : index
    %c0_1 = arith.constant 0 : index
    %0 = vector.load %arg2[%c0, %c0_0, %c0_1] : memref<1x1x1xf32, #tpu.memory_space<vmem>>, vector<1x1x1xf32>
    %c0_2 = arith.constant 0 : index
    %c0_3 = arith.constant 0 : index
    %c0_4 = arith.constant 0 : index
    %1 = vector.load %arg3[%c0_2, %c0_3, %c0_4] : memref<1x5x128xf32, #tpu.memory_space<vmem>>, vector<1x5x128xf32>
    %2 = vector.broadcast %0 : vector<1x1x1xf32> to vector<1x5x128xf32>
    %3 = arith.mulf %1, %2 : vector<1x5x128xf32>
    %c0_5 = arith.constant 0 : index
    %c0_6 = arith.constant 0 : index
    %c0_7 = arith.constant 0 : index
    %4 = vector.load %arg4[%c0_5, %c0_6, %c0_7] : memref<1x5x128xf32, #tpu.memory_space<vmem>>, vector<1x5x128xf32>
    tpu.vector_store %arg4[%c0_5, %c0_6, %c0_7], %3 {strides = array<i32>} : memref<1x5x128xf32, #tpu.memory_space<vmem>>, vector<1x5x128xf32>,
    return
  }
  func.func @transform_0(%arg0: i32, %arg1: i32) -> (i32, i32, i32) {
    %c0_i32 = arith.constant 0 : i32
    %c0_i32_0 = arith.constant 0 : i32
    %c0_i32_1 = arith.constant 0 : i32
    return %arg0, %c0_i32, %c0_i32_0 : i32, i32, i32
  }
  func.func @transform_1(%arg0: i32, %arg1: i32) -> (i32, i32, i32) {
    %c0_i32 = arith.constant 0 : i32
    %c0_i32_0 = arith.constant 0 : i32
    return %arg0, %arg1, %c0_i32 : i32, i32, i32
  }
  func.func @transform_2(%arg0: i32, %arg1: i32) -> (i32, i32, i32) {
    %c0_i32 = arith.constant 0 : i32
    %c0_i32_0 = arith.constant 0 : i32
    return %arg0, %arg1, %c0_i32 : i32, i32, i32
  }
}

</mosaic_0001>

<llo_original>
// kernel: tpu_custom_call.1
$region0: #{tpu_custom_call.1}
  #allocation0 [shape = 'u32[]', space=smem, size = 0x4, offset = 0x4, fixed_abs, tag = 'smem constant byte address 0x4 - core index']
  #allocation1 [shape = 'u32[144,128]{1,0:T(1,128)}', space=vmem, size = 0x12000, scoped, tag = 'internal scratch']
  %s0 = inlined_call_operand.vmem [shape: f32[2,1,1], index: 0, kind: input, shape index: {}]
  %s1 = inlined_call_operand.vmem [shape: f32[2,5,128], index: 1, kind: input, shape index: {}]
  %s2 = inlined_call_operand.vmem [shape: f32[2,5,128], index: 2, kind: output, shape index: {}]
  %s3 = sld [smem:[#allocation0]]
  $region41: #{tpu_custom_call.1} parent=0
    _
  %s5 = ssub.s32 1, %s3
  %s6 = scalar_select 0, %s5, %s3
  loop: start=0, step=1, limit=4
  $region2: #{tpu_custom_call.1} parent=0 // loop_pre_header
    _
  $region3: #{tpu_custom_call.1} parent=0 // loop_header
    %s8 = sphi 0, %s12
    %p9 = scmp.ge.s32.totalorder %s8, 4
    %s15 = sphi 0, %s27
    %s16 = sphi 0, %s23
    %s17 = sphi 0, %s15
    %s18 = sphi 0, %s16
    %s19 = sphi 0, %s17
    %s20 = sphi 0, %s18
    %s30 = sphi 0, %s32
    %s33 = sphi 0, %s30
    %s34 = sphi 0, %s33
    %s50 = sphi 0, %s34
    %s58 = sphi 0, %s60
    %s61 = sphi 0, %s58
    %s62 = sphi 0, %s61
    %s78 = sphi 0, %s62
    %s86 = sphi 0, %s88
    %s89 = sphi 0, %s86
    %s90 = sphi 0, %s89
    %s106 = sphi 0, %s90
  $region4: #{tpu_custom_call.1} parent=0 // loop_header_branch
    %11 = sbr.rel (%p9) target = $region8
  $region5: #{tpu_custom_call.1} parent=0 // loop_body
    %s13 = ssub.s32 %s8, 1
    %s14 = ssub.s32 %s8, 2
    %s21 = sadd.s32 1, %s16
    %p22 = scmp.ge.s32.totalorder %s21, 1
    %s23 = scalar_select %p22, 0, %s21
    %s24 = sadd.s32 1, %s15
    %s25 = scalar_select %p22, %s24, %s15
    %p26 = scmp.ge.s32.totalorder %s25, 2
    %s27 = scalar_select %p26, 0, %s25
    %s28 = ssub.s32 %s15, %s27
    %p29 = scmp.eq.s32.totalorder %s28, 0
    %s31 = sadd.s32 %s30, 1
    %s32 = scalar_select %p29, %s30, %s31
    %p35 = pneg %p29
    %p36 = scmp.eq.s32.totalorder %s8, 1
    %p37 = por %p35, %p36
    %p38 = scmp.ne.s32.totalorder %s30, %s33
    %p39 = scmp.eq.s32.totalorder %s8, 0
    %p40 = por %p38, %p39
    %p41 = scmp.ne.s32.totalorder %s30, %s33
    %p42 = scmp.eq.s32.totalorder %s13, 1
    %p43 = por %p41, %p42
    %p44 = scmp.ne.s32.totalorder %s33, %s34
    %p45 = scmp.eq.s32.totalorder %s13, 0
    %p46 = por %p44, %p45
    %p47 = scmp.ne.s32.totalorder %s33, %s34
    %p48 = scmp.eq.s32.totalorder %s14, 1
    %p49 = por %p47, %p48
    %p51 = scmp.ne.s32.totalorder %s34, %s50
    %p52 = scmp.eq.s32.totalorder %s14, 0
    %p53 = por %p51, %p52
    %s54 = ssub.s32 %s15, %s27
    %s55 = ssub.s32 %s16, %s23
    %s56 = sor.u32 %s54, %s55
    %p57 = scmp.eq.s32.totalorder %s56, 0
    %s59 = sadd.s32 %s58, 1
    %s60 = scalar_select %p57, %s58, %s59
    %p63 = pneg %p57
    %p64 = scmp.eq.s32.totalorder %s8, 1
    %p65 = por %p63, %p64
    %p66 = scmp.ne.s32.totalorder %s58, %s61
    %p67 = scmp.eq.s32.totalorder %s8, 0
    %p68 = por %p66, %p67
    %p69 = scmp.ne.s32.totalorder %s58, %s61
    %p70 = scmp.eq.s32.totalorder %s13, 1
    %p71 = por %p69, %p70
    %p72 = scmp.ne.s32.totalorder %s61, %s62
    %p73 = scmp.eq.s32.totalorder %s13, 0
    %p74 = por %p72, %p73
    %p75 = scmp.ne.s32.totalorder %s61, %s62
    %p76 = scmp.eq.s32.totalorder %s14, 1
    %p77 = por %p75, %p76
    %p79 = scmp.ne.s32.totalorder %s62, %s78
    %p80 = scmp.eq.s32.totalorder %s14, 0
    %p81 = por %p79, %p80
    %s82 = ssub.s32 %s15, %s27
    %s83 = ssub.s32 %s16, %s23
    %s84 = sor.u32 %s82, %s83
    %p85 = scmp.eq.s32.totalorder %s84, 0
    %s87 = sadd.s32 %s86, 1
    %s88 = scalar_select %p85, %s86, %s87
    %p91 = pneg %p85
    %p92 = scmp.eq.s32.totalorder %s8, 1
    %p93 = por %p91, %p92
    %p94 = scmp.ne.s32.totalorder %s86, %s89
    %p95 = scmp.eq.s32.totalorder %s8, 0
    %p96 = por %p94, %p95
    %p97 = scmp.ne.s32.totalorder %s86, %s89
    %p98 = scmp.eq.s32.totalorder %s13, 1
    %p99 = por %p97, %p98
    %p100 = scmp.ne.s32.totalorder %s89, %s90
    %p101 = scmp.eq.s32.totalorder %s13, 0
    %p102 = por %p100, %p101
    %p103 = scmp.ne.s32.totalorder %s89, %s90
    %p104 = scmp.eq.s32.totalorder %s14, 1
    %p105 = por %p103, %p104
    %p107 = scmp.ne.s32.totalorder %s90, %s106
    %p108 = scmp.eq.s32.totalorder %s14, 0
    %p109 = por %p107, %p108
    %p110 = scmp.le.s32.totalorder 1, %s8
    %p111 = scmp.lt.s32.totalorder %s8, 3
    %p112 = pnand %p110, %p111
    %p113 = pneg %p112
    // Predicated region
    $region9: #{tpu_custom_call.1} parent=5 // pred_check
      _
    $region10: #{tpu_custom_call.1} parent=5 // pred_check_branch
      %115 = sbr.rel (%p112) target = $region12
    $region11: #{tpu_custom_call.1} parent=5 // pred_region
      %s116 = ssub.s32 %s8, 1
    $region12: #{tpu_custom_call.1} parent=5 // pred_fallthru
      _
    %p117 = scmp.lt.s32.totalorder %s8, 2
    // Predicated region
    $region13: #{tpu_custom_call.1} parent=5 // pred_check
      %p118 = pneg %p117
    $region14: #{tpu_custom_call.1} parent=5 // pred_check_branch
      %120 = sbr.rel (%p118) target = $region16
    $region15: #{tpu_custom_call.1} parent=5 // pred_region
      // Predicated region
      $region17: #{tpu_custom_call.1} parent=15 // pred_check
        %p121 = pneg %p40
      $region18: #{tpu_custom_call.1} parent=15 // pred_check_branch
        %123 = sbr.rel (%p121) target = $region20
      $region19: #{tpu_custom_call.1} parent=15 // pred_region
        %p124 = scmp.lt.s32.totalorder %s15, 1
        %s125 = scalar_select %p124, %s15, 1
        %s126 = scalar_lea.vmem %s0, %s125
      $region20: #{tpu_custom_call.1} parent=15 // pred_fallthru
        _
      // Predicated region
      $region21: #{tpu_custom_call.1} parent=15 // pred_check
        %p127 = pneg %p68
      $region22: #{tpu_custom_call.1} parent=15 // pred_check_branch
        %129 = sbr.rel (%p127) target = $region24
      $region23: #{tpu_custom_call.1} parent=15 // pred_region
        %p130 = scmp.lt.s32.totalorder %s15, 1
        %s131 = scalar_select %p130, %s15, 1
        %p132 = scmp.lt.s32.totalorder %s16, 0
        %s133 = scalar_select %p132, %s16, 0
        %s134 = sadd.s32 %s133, %s131
        %s135 = smul.addr %s134, 8
        %s136 = scalar_lea.vmem %s1, %s135
      $region24: #{tpu_custom_call.1} parent=15 // pred_fallthru
        _
    $region16: #{tpu_custom_call.1} parent=5 // pred_fallthru
      _
    %p137 = scmp.le.s32.totalorder 1, %s8
    %p138 = scmp.lt.s32.totalorder %s8, 3
    %p139 = pnand %p137, %p138
    %p140 = pneg %p139
    // Predicated region
    $region25: #{tpu_custom_call.1} parent=5 // pred_check
      _
    $region26: #{tpu_custom_call.1} parent=5 // pred_check_branch
      %142 = sbr.rel (%p139) target = $region28
    $region27: #{tpu_custom_call.1} parent=5 // pred_region
      %s143 = ssub.s32 %s8, 1
      %p144 = scmp.lt.s32.totalorder %s17, 1
      %s145 = scalar_select %p144, %s17, 1
      %s146 = scalar_lea.vmem %s0, %s145
      %p147 = pneg %p46
      %p148 = pneg %p43
      %p149 = scmp.lt.s32.totalorder %s17, 1
      %s150 = scalar_select %p149, %s17, 1
      %p151 = scmp.lt.s32.totalorder %s18, 0
      %s152 = scalar_select %p151, %s18, 0
      %s153 = sadd.s32 %s152, %s150
      %s154 = smul.addr %s153, 8
      %s155 = scalar_lea.vmem %s1, %s154
      %p156 = pneg %p74
      %p157 = pneg %p71
      %p158 = pneg %p102
      %p159 = pneg %p99
      %p160 = scmp.lt.s32.totalorder %s17, 1
      %s161 = scalar_select %p160, %s17, 1
      %p162 = scmp.lt.s32.totalorder %s18, 0
      %s163 = scalar_select %p162, %s18, 0
      %s164 = sadd.s32 %s163, %s161
      %s165 = smul.addr %s164, 8
      %s166 = scalar_lea.vmem %s2, %s165
      %p167 = scmp.lt.s32.totalorder %s17, 1
      %s168 = scalar_select %p167, %s17, 1
      %s169 = scalar_lea.vmem %s0, %s168
      %p170 = scmp.lt.s32.totalorder %s17, 1
      %s171 = scalar_select %p170, %s17, 1
      %p172 = scmp.lt.s32.totalorder %s18, 0
      %s173 = scalar_select %p172, %s18, 0
      %s174 = sadd.s32 %s173, %s171
      %s175 = smul.addr %s174, 8
      %s176 = scalar_lea.vmem %s1, %s175
      %p177 = scmp.lt.s32.totalorder %s17, 1
      %s178 = scalar_select %p177, %s17, 1
      %p179 = scmp.lt.s32.totalorder %s18, 0
      %s180 = scalar_select %p179, %s18, 0
      %s181 = sadd.s32 %s180, %s178
      %s182 = smul.addr %s181, 8
      %s183 = scalar_lea.vmem %s2, %s182
      %v184 = vld [vmem:[%s169] sm:$0x1]
      %v185 = vld [vmem:[%s176] sm:$0x1f]
      %v187 = vlaneseq
      %v188 = vshrl.u32 %v187, 7
      %v189 = vsub.s32 0, %v188
      %v190 = vrot.slane %v184, %v189
      %191 = vset.pattern.permute.xlu0 0
      %192 = vperm.xlu0 %191, %v190
      %v193 = vpop.permute.xlu0 %192
      %v195 = vmul.f32 %v185, %v193
      %196 = vst [vmem:[%s183] sm:$0x1f] %v195
      %p197 = scmp.lt.s32.totalorder %s17, 1
      %s198 = scalar_select %p197, %s17, 1
      %p199 = scmp.lt.s32.totalorder %s18, 0
      %s200 = scalar_select %p199, %s18, 0
      %s201 = sadd.s32 %s200, %s198
      %s202 = smul.addr %s201, 8
      %s203 = scalar_lea.vmem %s2, %s202
      // Predicated region
      $region29: #{tpu_custom_call.1} parent=27 // pred_check
        %p204 = pneg %p99
      $region30: #{tpu_custom_call.1} parent=27 // pred_check_branch
        %206 = sbr.rel (%p204) target = $region32
      $region31: #{tpu_custom_call.1} parent=27 // pred_region
        _
      $region32: #{tpu_custom_call.1} parent=27 // pred_fallthru
        _
    $region28: #{tpu_custom_call.1} parent=5 // pred_fallthru
      _
    %p207 = scmp.le.s32.totalorder 2, %s8
    // Predicated region
    $region33: #{tpu_custom_call.1} parent=5 // pred_check
      %p208 = pneg %p207
    $region34: #{tpu_custom_call.1} parent=5 // pred_check_branch
      %210 = sbr.rel (%p208) target = $region36
    $region35: #{tpu_custom_call.1} parent=5 // pred_region
      %s211 = ssub.s32 %s8, 2
      // Predicated region
      $region37: #{tpu_custom_call.1} parent=35 // pred_check
        %p212 = pneg %p105
      $region38: #{tpu_custom_call.1} parent=35 // pred_check_branch
        %214 = sbr.rel (%p212) target = $region40
      $region39: #{tpu_custom_call.1} parent=35 // pred_region
        %p215 = scmp.lt.s32.totalorder %s19, 1
        %s216 = scalar_select %p215, %s19, 1
        %p217 = scmp.lt.s32.totalorder %s20, 0
        %s218 = scalar_select %p217, %s20, 0
        %s219 = sadd.s32 %s218, %s216
        %s220 = smul.addr %s219, 8
        %s221 = scalar_lea.vmem %s2, %s220
      $region40: #{tpu_custom_call.1} parent=35 // pred_fallthru
        _
    $region36: #{tpu_custom_call.1} parent=5 // pred_fallthru
      _
  $region6: #{tpu_custom_call.1} parent=0 // loop_footer
    %s12 = sadd.s32 1, %s8
  $region7: #{tpu_custom_call.1} parent=0 // loop_footer_branch
    %7 = sbr.rel target = $region3
  $region8: #{tpu_custom_call.1} parent=0 // loop_exit
    _

</llo_original>
